<compile_context>
chip_gen: v7x
topology: tpu7x:2x2x1
jax: 0.10.0
libtpu: 0.0.40
codegen_flags: <defaults>
</compile_context>

<pallas_src>
import functools

import jax
import jax.numpy as jnp
from jax.experimental import pallas as pl
from jax.experimental.pallas import tpu as pltpu


def _channel_shuffle_kernel(x_ref, o_ref, *, groups, cpg):
    # x_ref / o_ref: (C, TL) tiles (batch dim squeezed by the BlockSpec).
    c = groups * cpg
    if groups == 1 or cpg == 1:
        # Permutation is the identity in these cases.
        o_ref[...] = x_ref[...]
        return
    # out channel oc = gi*cpg + k  <-  in channel ic = k*groups + gi
    # All starts are static Python ints, all slices are unit-stride.
    for oc in range(c):
        ic = (oc % cpg) * groups + (oc // cpg)
        o_ref[pl.ds(oc, 1), :] = x_ref[pl.ds(ic, 1), :]


def _pick_lane_tile(l, c, itemsize, budget_bytes=12 * 1024 * 1024):
    """Largest lane tile (multiple of 128, dividing L) whose double-buffered
    in+out working set (~4*C*TL*itemsize) stays under `budget_bytes`."""
    if l % 128 != 0:
        return l                      # ragged / small L: use the full lane dim
    max_tl = budget_bytes // (4 * c * itemsize)
    if max_tl >= l:
        return l
    tl = max(128, (max_tl // 128) * 128)
    while l % tl != 0:
        tl -= 128
        if tl < 128:
            return l                  # no 128-multiple divisor; fall back to full L
    return tl


def channel_shuffle(x, groups):
    """x: (N, C, L) array. Returns channel-shuffled array of same shape/dtype."""
    n, c, l = x.shape
    assert c % groups == 0, "channels must be divisible by groups"
    cpg = c // groups
    tl = _pick_lane_tile(l, c, jnp.dtype(x.dtype).itemsize)
    grid = (n, l // tl)

    kernel = functools.partial(_channel_shuffle_kernel, groups=groups, cpg=cpg)
    return pl.pallas_call(
        kernel,
        out_shape=jax.ShapeDtypeStruct((n, c, l), x.dtype),
        grid=grid,
        in_specs=[pl.BlockSpec((None, c, tl), lambda ni, li: (ni, 0, li))],
        out_specs=pl.BlockSpec((None, c, tl), lambda ni, li: (ni, 0, li)),
        compiler_params=pltpu.CompilerParams(
            dimension_semantics=("parallel", "parallel"),
            vmem_limit_bytes=32 * 1024 * 1024,
        ),
    )(x)


def _reference_channel_shuffle(x, groups):
    # Mirrors the PyTorch module: view(n, c//g, g, l).transpose(1, 2).view(n, c, l)
    n, c, l = x.shape
    return (
        x.reshape(n, c // groups, groups, l)
         .transpose(0, 2, 1, 3)
         .reshape(n, c, l)
    )


if __name__ == "__main__":
    # Primary case: groups != channels/groups so the permutation direction is
    # actually exercised (not hidden by a square g == c/g case).
    key = jax.random.PRNGKey(0)
    n, c, l, groups = 2, 6, 16, 3
    x = jax.random.normal(key, (n, c, l), dtype=jnp.float32)
    out = jax.block_until_ready(channel_shuffle(x, groups))
    ref = _reference_channel_shuffle(x, groups)
    assert out.shape == (n, c, l)
    assert out.dtype == x.dtype
    assert jnp.allclose(out, ref), "mismatch vs reference (c=6, g=3)"

    # Lane-aligned case (L multiple of 128) to exercise the tiled, lane-dense path.
    key2 = jax.random.PRNGKey(0)
    n2, c2, l2, g2 = 2, 8, 256, 2
    x2 = jax.random.normal(key2, (n2, c2, l2), dtype=jnp.float32)
    out2 = jax.block_until_ready(channel_shuffle(x2, g2))
    ref2 = _reference_channel_shuffle(x2, g2)
    assert jnp.allclose(out2, ref2), "mismatch vs reference (c=8, g=2)"

    # Degenerate case groups == 1 (identity path).
    x3 = jax.random.normal(jax.random.PRNGKey(0), (2, 4, 16), dtype=jnp.float32)
    out3 = jax.block_until_ready(channel_shuffle(x3, 1))
    assert jnp.allclose(out3, x3), "mismatch vs reference (g=1 identity)"

    print("KERNEL_OK")
</pallas_src>

<mosaic_0001>
module attributes {stable_mosaic.version = 11 : i64} {
  func.func @_channel_shuffle_kernel(%arg0: i32, %arg1: i32, %arg2: memref<1x6x16xf32, #tpu.memory_space<vmem>>, %arg3: memref<1x6x16xf32, #tpu.memory_space<vmem>>) attributes {dimension_semantics = [#tpu.dimension_semantics<parallel>, #tpu.dimension_semantics<parallel>], iteration_bounds = array<i64: 2, 1>, scalar_prefetch = 0 : i64, scratch_operands = 0 : i64, tpu.core_type = #tpu.core_type<tc>, window_params = [{transform_indices = @transform_0, window_bounds = array<i64: 1, 6, 16>}, {transform_indices = @transform_1, window_bounds = array<i64: 1, 6, 16>}]} {
    %c0 = arith.constant 0 : index
    %c0_0 = arith.constant 0 : index
    %c0_1 = arith.constant 0 : index
    %0 = vector.load %arg2[%c0, %c0_0, %c0_1] : memref<1x6x16xf32, #tpu.memory_space<vmem>>, vector<1x1x16xf32>
    %1 = vector.shape_cast %0 : vector<1x1x16xf32> to vector<1x16xf32>
    %c0_2 = arith.constant 0 : index
    %c0_3 = arith.constant 0 : index
    %c0_4 = arith.constant 0 : index
    %2 = vector.load %arg3[%c0_2, %c0_3, %c0_4] : memref<1x6x16xf32, #tpu.memory_space<vmem>>, vector<1x1x16xf32>
    %3 = vector.shape_cast %2 : vector<1x1x16xf32> to vector<1x16xf32>
    %4 = vector.shape_cast %1 : vector<1x16xf32> to vector<1x1x16xf32>
    tpu.vector_store %arg3[%c0_2, %c0_3, %c0_4], %4 {strides = array<i32>} : memref<1x6x16xf32, #tpu.memory_space<vmem>>, vector<1x1x16xf32>,
    %c0_5 = arith.constant 0 : index
    %c3 = arith.constant 3 : index
    %c0_6 = arith.constant 0 : index
    %5 = vector.load %arg2[%c0_5, %c3, %c0_6] : memref<1x6x16xf32, #tpu.memory_space<vmem>>, vector<1x1x16xf32>
    %6 = vector.shape_cast %5 : vector<1x1x16xf32> to vector<1x16xf32>
    %c0_7 = arith.constant 0 : index
    %c1 = arith.constant 1 : index
    %c0_8 = arith.constant 0 : index
    %7 = vector.load %arg3[%c0_7, %c1, %c0_8] : memref<1x6x16xf32, #tpu.memory_space<vmem>>, vector<1x1x16xf32>
    %8 = vector.shape_cast %7 : vector<1x1x16xf32> to vector<1x16xf32>
    %9 = vector.shape_cast %6 : vector<1x16xf32> to vector<1x1x16xf32>
    tpu.vector_store %arg3[%c0_7, %c1, %c0_8], %9 {strides = array<i32>} : memref<1x6x16xf32, #tpu.memory_space<vmem>>, vector<1x1x16xf32>,
    %c0_9 = arith.constant 0 : index
    %c1_10 = arith.constant 1 : index
    %c0_11 = arith.constant 0 : index
    %10 = vector.load %arg2[%c0_9, %c1_10, %c0_11] : memref<1x6x16xf32, #tpu.memory_space<vmem>>, vector<1x1x16xf32>
    %11 = vector.shape_cast %10 : vector<1x1x16xf32> to vector<1x16xf32>
    %c0_12 = arith.constant 0 : index
    %c2 = arith.constant 2 : index
    %c0_13 = arith.constant 0 : index
    %12 = vector.load %arg3[%c0_12, %c2, %c0_13] : memref<1x6x16xf32, #tpu.memory_space<vmem>>, vector<1x1x16xf32>
    %13 = vector.shape_cast %12 : vector<1x1x16xf32> to vector<1x16xf32>
    %14 = vector.shape_cast %11 : vector<1x16xf32> to vector<1x1x16xf32>
    tpu.vector_store %arg3[%c0_12, %c2, %c0_13], %14 {strides = array<i32>} : memref<1x6x16xf32, #tpu.memory_space<vmem>>, vector<1x1x16xf32>,
    %c0_14 = arith.constant 0 : index
    %c4 = arith.constant 4 : index
    %c0_15 = arith.constant 0 : index
    %15 = vector.load %arg2[%c0_14, %c4, %c0_15] : memref<1x6x16xf32, #tpu.memory_space<vmem>>, vector<1x1x16xf32>
    %16 = vector.shape_cast %15 : vector<1x1x16xf32> to vector<1x16xf32>
    %c0_16 = arith.constant 0 : index
    %c3_17 = arith.constant 3 : index
    %c0_18 = arith.constant 0 : index
    %17 = vector.load %arg3[%c0_16, %c3_17, %c0_18] : memref<1x6x16xf32, #tpu.memory_space<vmem>>, vector<1x1x16xf32>
    %18 = vector.shape_cast %17 : vector<1x1x16xf32> to vector<1x16xf32>
    %19 = vector.shape_cast %16 : vector<1x16xf32> to vector<1x1x16xf32>
    tpu.vector_store %arg3[%c0_16, %c3_17, %c0_18], %19 {strides = array<i32>} : memref<1x6x16xf32, #tpu.memory_space<vmem>>, vector<1x1x16xf32>,
    %c0_19 = arith.constant 0 : index
    %c2_20 = arith.constant 2 : index
    %c0_21 = arith.constant 0 : index
    %20 = vector.load %arg2[%c0_19, %c2_20, %c0_21] : memref<1x6x16xf32, #tpu.memory_space<vmem>>, vector<1x1x16xf32>
    %21 = vector.shape_cast %20 : vector<1x1x16xf32> to vector<1x16xf32>
    %c0_22 = arith.constant 0 : index
    %c4_23 = arith.constant 4 : index
    %c0_24 = arith.constant 0 : index
    %22 = vector.load %arg3[%c0_22, %c4_23, %c0_24] : memref<1x6x16xf32, #tpu.memory_space<vmem>>, vector<1x1x16xf32>
    %23 = vector.shape_cast %22 : vector<1x1x16xf32> to vector<1x16xf32>
    %24 = vector.shape_cast %21 : vector<1x16xf32> to vector<1x1x16xf32>
    tpu.vector_store %arg3[%c0_22, %c4_23, %c0_24], %24 {strides = array<i32>} : memref<1x6x16xf32, #tpu.memory_space<vmem>>, vector<1x1x16xf32>,
    %c0_25 = arith.constant 0 : index
    %c5 = arith.constant 5 : index
    %c0_26 = arith.constant 0 : index
    %25 = vector.load %arg2[%c0_25, %c5, %c0_26] : memref<1x6x16xf32, #tpu.memory_space<vmem>>, vector<1x1x16xf32>
    %26 = vector.shape_cast %25 : vector<1x1x16xf32> to vector<1x16xf32>
    %c0_27 = arith.constant 0 : index
    %c5_28 = arith.constant 5 : index
    %c0_29 = arith.constant 0 : index
    %27 = vector.load %arg3[%c0_27, %c5_28, %c0_29] : memref<1x6x16xf32, #tpu.memory_space<vmem>>, vector<1x1x16xf32>
    %28 = vector.shape_cast %27 : vector<1x1x16xf32> to vector<1x16xf32>
    %29 = vector.shape_cast %26 : vector<1x16xf32> to vector<1x1x16xf32>
    tpu.vector_store %arg3[%c0_27, %c5_28, %c0_29], %29 {strides = array<i32>} : memref<1x6x16xf32, #tpu.memory_space<vmem>>, vector<1x1x16xf32>,
    return
  }
  func.func @transform_0(%arg0: i32, %arg1: i32) -> (i32, i32, i32) {
    %c0_i32 = arith.constant 0 : i32
    %c0_i32_0 = arith.constant 0 : i32
    return %arg0, %c0_i32, %arg1 : i32, i32, i32
  }
  func.func @transform_1(%arg0: i32, %arg1: i32) -> (i32, i32, i32) {
    %c0_i32 = arith.constant 0 : i32
    %c0_i32_0 = arith.constant 0 : i32
    return %arg0, %c0_i32, %arg1 : i32, i32, i32
  }
}

</mosaic_0001>

<llo_original>
// kernel: tpu_custom_call.1
$region0: #{tpu_custom_call.1}
  #allocation0 [shape = 'u32[]', space=smem, size = 0x4, offset = 0x4, fixed_abs, tag = 'smem constant byte address 0x4 - core index']
  #allocation1 [shape = 'u32[144,128]{1,0:T(1,128)}', space=vmem, size = 0x12000, scoped, tag = 'internal scratch']
  %s0 = inlined_call_operand.vmem [shape: f32[2,6,16], index: 0, kind: input, shape index: {}]
  %s1 = inlined_call_operand.vmem [shape: f32[2,6,16], index: 1, kind: output, shape index: {}]
  %s2 = sld [smem:[#allocation0]]
  $region37: #{tpu_custom_call.1} parent=0
    _
  %s4 = ssub.s32 1, %s2
  %s5 = scalar_select 0, %s4, %s2
  loop: start=0, step=1, limit=4
  $region2: #{tpu_custom_call.1} parent=0 // loop_pre_header
    _
  $region3: #{tpu_custom_call.1} parent=0 // loop_header
    %s7 = sphi 0, %s11
    %p8 = scmp.ge.s32.totalorder %s7, 4
    %s14 = sphi 0, %s26
    %s15 = sphi 0, %s22
    %s16 = sphi 0, %s14
    %s17 = sphi 0, %s15
    %s18 = sphi 0, %s16
    %s19 = sphi 0, %s17
    %s31 = sphi 0, %s33
    %s34 = sphi 0, %s31
    %s35 = sphi 0, %s34
    %s51 = sphi 0, %s35
    %s59 = sphi 0, %s61
    %s62 = sphi 0, %s59
    %s63 = sphi 0, %s62
    %s79 = sphi 0, %s63
  $region4: #{tpu_custom_call.1} parent=0 // loop_header_branch
    %10 = sbr.rel (%p8) target = $region8
  $region5: #{tpu_custom_call.1} parent=0 // loop_body
    %s12 = ssub.s32 %s7, 1
    %s13 = ssub.s32 %s7, 2
    %s20 = sadd.s32 1, %s15
    %p21 = scmp.ge.s32.totalorder %s20, 1
    %s22 = scalar_select %p21, 0, %s20
    %s23 = sadd.s32 1, %s14
    %s24 = scalar_select %p21, %s23, %s14
    %p25 = scmp.ge.s32.totalorder %s24, 2
    %s26 = scalar_select %p25, 0, %s24
    %s27 = ssub.s32 %s14, %s26
    %s28 = ssub.s32 %s15, %s22
    %s29 = sor.u32 %s27, %s28
    %p30 = scmp.eq.s32.totalorder %s29, 0
    %s32 = sadd.s32 %s31, 1
    %s33 = scalar_select %p30, %s31, %s32
    %p36 = pneg %p30
    %p37 = scmp.eq.s32.totalorder %s7, 1
    %p38 = por %p36, %p37
    %p39 = scmp.ne.s32.totalorder %s31, %s34
    %p40 = scmp.eq.s32.totalorder %s7, 0
    %p41 = por %p39, %p40
    %p42 = scmp.ne.s32.totalorder %s31, %s34
    %p43 = scmp.eq.s32.totalorder %s12, 1
    %p44 = por %p42, %p43
    %p45 = scmp.ne.s32.totalorder %s34, %s35
    %p46 = scmp.eq.s32.totalorder %s12, 0
    %p47 = por %p45, %p46
    %p48 = scmp.ne.s32.totalorder %s34, %s35
    %p49 = scmp.eq.s32.totalorder %s13, 1
    %p50 = por %p48, %p49
    %p52 = scmp.ne.s32.totalorder %s35, %s51
    %p53 = scmp.eq.s32.totalorder %s13, 0
    %p54 = por %p52, %p53
    %s55 = ssub.s32 %s14, %s26
    %s56 = ssub.s32 %s15, %s22
    %s57 = sor.u32 %s55, %s56
    %p58 = scmp.eq.s32.totalorder %s57, 0
    %s60 = sadd.s32 %s59, 1
    %s61 = scalar_select %p58, %s59, %s60
    %p64 = pneg %p58
    %p65 = scmp.eq.s32.totalorder %s7, 1
    %p66 = por %p64, %p65
    %p67 = scmp.ne.s32.totalorder %s59, %s62
    %p68 = scmp.eq.s32.totalorder %s7, 0
    %p69 = por %p67, %p68
    %p70 = scmp.ne.s32.totalorder %s59, %s62
    %p71 = scmp.eq.s32.totalorder %s12, 1
    %p72 = por %p70, %p71
    %p73 = scmp.ne.s32.totalorder %s62, %s63
    %p74 = scmp.eq.s32.totalorder %s12, 0
    %p75 = por %p73, %p74
    %p76 = scmp.ne.s32.totalorder %s62, %s63
    %p77 = scmp.eq.s32.totalorder %s13, 1
    %p78 = por %p76, %p77
    %p80 = scmp.ne.s32.totalorder %s63, %s79
    %p81 = scmp.eq.s32.totalorder %s13, 0
    %p82 = por %p80, %p81
    %p83 = scmp.le.s32.totalorder 1, %s7
    %p84 = scmp.lt.s32.totalorder %s7, 3
    %p85 = pnand %p83, %p84
    %p86 = pneg %p85
    // Predicated region
    $region9: #{tpu_custom_call.1} parent=5 // pred_check
      _
    $region10: #{tpu_custom_call.1} parent=5 // pred_check_branch
      %88 = sbr.rel (%p85) target = $region12
    $region11: #{tpu_custom_call.1} parent=5 // pred_region
      %s89 = ssub.s32 %s7, 1
    $region12: #{tpu_custom_call.1} parent=5 // pred_fallthru
      _
    %p90 = scmp.lt.s32.totalorder %s7, 2
    // Predicated region
    $region13: #{tpu_custom_call.1} parent=5 // pred_check
      %p91 = pneg %p90
    $region14: #{tpu_custom_call.1} parent=5 // pred_check_branch
      %93 = sbr.rel (%p91) target = $region16
    $region15: #{tpu_custom_call.1} parent=5 // pred_region
      // Predicated region
      $region17: #{tpu_custom_call.1} parent=15 // pred_check
        %p94 = pneg %p41
      $region18: #{tpu_custom_call.1} parent=15 // pred_check_branch
        %96 = sbr.rel (%p94) target = $region20
      $region19: #{tpu_custom_call.1} parent=15 // pred_region
        %p97 = scmp.lt.s32.totalorder %s14, 1
        %s98 = scalar_select %p97, %s14, 1
        %p99 = scmp.lt.s32.totalorder %s15, 0
        %s100 = scalar_select %p99, %s15, 0
        %s101 = sadd.s32 %s100, %s98
        %s102 = smul.addr %s101, 8
        %s103 = scalar_lea.vmem %s0, %s102
      $region20: #{tpu_custom_call.1} parent=15 // pred_fallthru
        _
    $region16: #{tpu_custom_call.1} parent=5 // pred_fallthru
      _
    %p104 = scmp.le.s32.totalorder 1, %s7
    %p105 = scmp.lt.s32.totalorder %s7, 3
    %p106 = pnand %p104, %p105
    %p107 = pneg %p106
    // Predicated region
    $region21: #{tpu_custom_call.1} parent=5 // pred_check
      _
    $region22: #{tpu_custom_call.1} parent=5 // pred_check_branch
      %109 = sbr.rel (%p106) target = $region24
    $region23: #{tpu_custom_call.1} parent=5 // pred_region
      %s110 = ssub.s32 %s7, 1
      %p111 = scmp.lt.s32.totalorder %s16, 1
      %s112 = scalar_select %p111, %s16, 1
      %p113 = scmp.lt.s32.totalorder %s17, 0
      %s114 = scalar_select %p113, %s17, 0
      %s115 = sadd.s32 %s114, %s112
      %s116 = smul.addr %s115, 8
      %s117 = scalar_lea.vmem %s0, %s116
      %p118 = pneg %p47
      %p119 = pneg %p44
      %p120 = pneg %p75
      %p121 = pneg %p72
      %p122 = scmp.lt.s32.totalorder %s16, 1
      %s123 = scalar_select %p122, %s16, 1
      %p124 = scmp.lt.s32.totalorder %s17, 0
      %s125 = scalar_select %p124, %s17, 0
      %s126 = sadd.s32 %s125, %s123
      %s127 = smul.addr %s126, 8
      %s128 = scalar_lea.vmem %s1, %s127
      %p129 = scmp.lt.s32.totalorder %s16, 1
      %s130 = scalar_select %p129, %s16, 1
      %p131 = scmp.lt.s32.totalorder %s17, 0
      %s132 = scalar_select %p131, %s17, 0
      %s133 = sadd.s32 %s132, %s130
      %s134 = smul.addr %s133, 8
      %s135 = scalar_lea.vmem %s0, %s134
      %p136 = scmp.lt.s32.totalorder %s16, 1
      %s137 = scalar_select %p136, %s16, 1
      %p138 = scmp.lt.s32.totalorder %s17, 0
      %s139 = scalar_select %p138, %s17, 0
      %s140 = sadd.s32 %s139, %s137
      %s141 = smul.addr %s140, 8
      %s142 = scalar_lea.vmem %s1, %s141
      %v143 = vld [vmem:[%s135] sm:$0x1]
      %vm144 = vcmask 122880
      %145 = vst.msk [vmem:[%s142] sm:$0x1] %vm144, %v143
      %v146 = vld [vmem:[%s135 + $0x3] sm:$0x1]
      %147 = vst.msk [vmem:[%s142 + $0x1] sm:$0x1] %vm144, %v146
      %v148 = vld [vmem:[%s135 + $0x1] sm:$0x1]
      %149 = vst.msk [vmem:[%s142 + $0x2] sm:$0x1] %vm144, %v148
      %v150 = vld [vmem:[%s135 + $0x4] sm:$0x1]
      %151 = vst.msk [vmem:[%s142 + $0x3] sm:$0x1] %vm144, %v150
      %v152 = vld [vmem:[%s135 + $0x2] sm:$0x1]
      %153 = vst.msk [vmem:[%s142 + $0x4] sm:$0x1] %vm144, %v152
      %v154 = vld [vmem:[%s135 + $0x5] sm:$0x1]
      %155 = vst.msk [vmem:[%s142 + $0x5] sm:$0x1] %vm144, %v154
      %p156 = scmp.lt.s32.totalorder %s16, 1
      %s157 = scalar_select %p156, %s16, 1
      %p158 = scmp.lt.s32.totalorder %s17, 0
      %s159 = scalar_select %p158, %s17, 0
      %s160 = sadd.s32 %s159, %s157
      %s161 = smul.addr %s160, 8
      %s162 = scalar_lea.vmem %s1, %s161
      // Predicated region
      $region25: #{tpu_custom_call.1} parent=23 // pred_check
        %p163 = pneg %p72
      $region26: #{tpu_custom_call.1} parent=23 // pred_check_branch
        %165 = sbr.rel (%p163) target = $region28
      $region27: #{tpu_custom_call.1} parent=23 // pred_region
        _
      $region28: #{tpu_custom_call.1} parent=23 // pred_fallthru
        _
    $region24: #{tpu_custom_call.1} parent=5 // pred_fallthru
      _
    %p166 = scmp.le.s32.totalorder 2, %s7
    // Predicated region
    $region29: #{tpu_custom_call.1} parent=5 // pred_check
      %p167 = pneg %p166
    $region30: #{tpu_custom_call.1} parent=5 // pred_check_branch
      %169 = sbr.rel (%p167) target = $region32
    $region31: #{tpu_custom_call.1} parent=5 // pred_region
      %s170 = ssub.s32 %s7, 2
      // Predicated region
      $region33: #{tpu_custom_call.1} parent=31 // pred_check
        %p171 = pneg %p78
      $region34: #{tpu_custom_call.1} parent=31 // pred_check_branch
        %173 = sbr.rel (%p171) target = $region36
      $region35: #{tpu_custom_call.1} parent=31 // pred_region
        %p174 = scmp.lt.s32.totalorder %s18, 1
        %s175 = scalar_select %p174, %s18, 1
        %p176 = scmp.lt.s32.totalorder %s19, 0
        %s177 = scalar_select %p176, %s19, 0
        %s178 = sadd.s32 %s177, %s175
        %s179 = smul.addr %s178, 8
        %s180 = scalar_lea.vmem %s1, %s179
      $region36: #{tpu_custom_call.1} parent=31 // pred_fallthru
        _
    $region32: #{tpu_custom_call.1} parent=5 // pred_fallthru
      _
  $region6: #{tpu_custom_call.1} parent=0 // loop_footer
    %s11 = sadd.s32 1, %s7
  $region7: #{tpu_custom_call.1} parent=0 // loop_footer_branch
    %6 = sbr.rel target = $region3
  $region8: #{tpu_custom_call.1} parent=0 // loop_exit
    _

</llo_original>
